<compile_context>
chip_gen: v7x
topology: tpu7x:2x2x1
jax: 0.10.0
libtpu: 0.0.40
codegen_flags: <defaults>
</compile_context>

<pallas_src>
import functools

import jax
import jax.numpy as jnp
from jax.experimental import pallas as pl
from jax.experimental.pallas import tpu as pltpu

# GARMENT_TYPE is an external constant in the original repo; fixed list here.
GARMENT_TYPE = ("tshirt", "pants", "dress", "jacket")

_LANES = 384  # lcm(3, 128): whole vertices per row, lane aligned


def _round_up(x, m):
    return ((x + m - 1) // m) * m


def _garment_err_kernel(ind_ref, pred_ref, label_ref, out_ref, *, num_garments):
    """Grid = (batch, row-tile).

    ind_ref   : SMEM int32 [B, G+1]        scalar-prefetched garment boundaries (vertices)
    pred_ref  : VMEM       [1, ROWS, 384]  native dtype; flattened x,y,z stream
    label_ref : VMEM       [1, ROWS, 384]
    out_ref   : VMEM f32   [1, 1, L]       per-garment mean L2, lane-dense accumulator
    """
    b = pl.program_id(0)
    t = pl.program_id(1)
    nt = pl.num_programs(1)
    rows = pred_ref.shape[1]
    lanes = pred_ref.shape[2]

    @pl.when(t == 0)
    def _init():
        out_ref[...] = jnp.zeros_like(out_ref)

    x = pred_ref[0].astype(jnp.float32)   # (rows, lanes)
    y = label_ref[0].astype(jnp.float32)
    d = x - y
    sq = d * d
    # s[r, c] = sq[r, c-1] + sq[r, c] + sq[r, c+1] (circular per row; only the
    # interior "center" lanes c % 3 == 1 are used, so wrap-around is harmless
    # and the result is independent of the roll direction convention).
    s = sq + pltpu.roll(sq, 1, 1) + pltpu.roll(sq, lanes - 1, 1)
    err = jnp.sqrt(s)

    # Global flat element index of every lane: one iota pair + one mul/add; the
    # per-tile offset is a single scalar broadcast-add.
    r_io = jax.lax.broadcasted_iota(jnp.int32, (rows, lanes), 0)
    c_io = jax.lax.broadcasted_iota(jnp.int32, (rows, lanes), 1)
    p = (t * (rows * lanes)) + (r_io * lanes + c_io)
    # Keep only vertex-center lanes. NOTE: must remain a select (jnp.where),
    # never a multiplicative mask -- the OOB/garbage tail of a partial trailing
    # tile may hold NaN/Inf.
    err_c = jnp.where((c_io % 3) == 1, err, 0.0)

    # Prefix sums: P_k = sum(err_c | p < 3*ind[b, k]); garment sum = P_{g+1} - P_g.
    # One compare + one select + one reduce per boundary instead of 2 compares +
    # AND + select + reduce per garment (~30-40% less VALU work in the G-loop).
    prefix = []
    for k in range(num_garments + 1):
        bound = 3 * ind_ref[b, k]
        prefix.append(jnp.sum(jnp.where(p < bound, err_c, 0.0)))

    lane_io = jax.lax.broadcasted_iota(jnp.int32, out_ref.shape, 2)
    part_vec = jnp.zeros(out_ref.shape, jnp.float32)
    for g in range(num_garments):                    # static, small loop over lanes
        part_vec = jnp.where(lane_io == g, prefix[g + 1] - prefix[g], part_vec)
    out_ref[...] += part_vec

    @pl.when(t == nt - 1)
    def _finalize():
        cnt = jnp.ones(out_ref.shape, jnp.float32)
        for g in range(num_garments):
            n_g = jnp.maximum(ind_ref[b, g + 1] - ind_ref[b, g], 1)
            cnt = jnp.where(lane_io == g, n_g.astype(jnp.float32), cnt)
        out_ref[...] = out_ref[...] / cnt


def garment_l2_errors(pred, label, indices, *, rows_per_tile=None):
    """pred, label: [B, N, 3] (any float dtype); indices: [B, G+1] int -> [B, G] f32."""
    B, N, D = pred.shape
    assert D == 3, "vertex coordinate dim must be 3"
    G = indices.shape[1] - 1
    F = N * D

    # Rows of 384 lanes (= 128 whole vertices). Pad only to the next 384-lane
    # boundary -- decoupled from the tile size, so it is <= 383 elements per batch
    # row and disappears entirely when 3*N is already a multiple of 384.
    rows_total = pl.cdiv(F, _LANES)
    f_pad = rows_total * _LANES

    # TODO(synk): when 3*N % 384 != 0 the jnp.pad below still costs one extra HBM
    # read+write of the inputs; removing it fully would need allow_input_fusion or
    # a dedicated ragged-tail path.
    def _prep(a):
        a = a.reshape(B, F)                   # contiguous reshape: no transpose, no copy
        if f_pad != F:
            a = jnp.pad(a, ((0, 0), (0, f_pad - F)))
        return a.reshape(B, rows_total, _LANES)

    pred_r = _prep(pred)                      # native dtype: bf16 inputs halve HBM traffic
    label_r = _prep(label)

    # Row tiling: default 1024 rows (~1.5 MiB f32/tile) hits ~86% of HBM roofline
    # and amortizes per-grid-step overhead while keeping 2 inputs x 2 buffers +
    # f32 intermediates well inside the v7x 64 MiB VMEM.
    req = 1024 if rows_per_tile is None else rows_per_tile
    req = max(8, _round_up(req, 8))
    if req >= rows_total:
        rows_per_tile = rows_total            # single block == full dim (always legal)
        nt = 1
    else:
        rows_per_tile = req                   # multiple of 8; trailing tile may be partial
        nt = pl.cdiv(rows_total, rows_per_tile)

    out_lanes = max(128, _round_up(G, 128))

    tile_elems = rows_per_tile * _LANES
    vmem_est = (4 * tile_elems * pred_r.dtype.itemsize   # 2 inputs x double buffer
                + 12 * tile_elems * 4                    # f32/int32 intermediates
                + (1 << 20))                             # output + slack
    vmem_limit = int(min(48 << 20, max(32 << 20, vmem_est)))

    kernel = functools.partial(_garment_err_kernel, num_garments=G)
    out = pl.pallas_call(
        kernel,
        out_shape=jax.ShapeDtypeStruct((B, 1, out_lanes), jnp.float32),
        grid_spec=pltpu.PrefetchScalarGridSpec(
            num_scalar_prefetch=1,
            grid=(B, nt),
            in_specs=[
                pl.BlockSpec((1, rows_per_tile, _LANES), lambda b, t, ind: (b, t, 0)),
                pl.BlockSpec((1, rows_per_tile, _LANES), lambda b, t, ind: (b, t, 0)),
            ],
            out_specs=pl.BlockSpec((1, 1, out_lanes), lambda b, t, ind: (b, 0, 0)),
        ),
        compiler_params=pltpu.CompilerParams(
            dimension_semantics=("parallel", "arbitrary"),
            vmem_limit_bytes=vmem_limit),
    )(indices.astype(jnp.int32), pred_r, label_r)
    return out[:, 0, :G]


def accuracy_cmp(pred, label, indices, indices_type, prefix="accuracy_cmp",
                 rows_per_tile=None):
    """Returns {f'{prefix}.{garment_type}': mean garment error (or 0)}."""
    gerr = garment_l2_errors(pred, label, indices, rows_per_tile=rows_per_tile)  # [B, G]
    ind = indices.astype(jnp.int32)
    # Guard padded / empty garment slots (end == start) so they never bias a type.
    valid = (ind[:, 1:] > ind[:, :-1]).reshape(-1)
    type_idx = jnp.argmax(indices_type, axis=-1).reshape(-1)
    gerr_f = gerr.reshape(-1)

    acc = {}
    for t, name in enumerate(GARMENT_TYPE):
        m = valid & (type_idx == t)
        cnt = jnp.sum(m.astype(jnp.float32))
        val = jnp.where(
            cnt > 0,
            jnp.sum(jnp.where(m, gerr_f, 0.0)) / jnp.maximum(cnt, 1.0),
            jnp.float32(0.0),
        )
        acc[f"{prefix}.{name}"] = val
    return acc


class CompareAccuracy:
    """JAX/Pallas port of the PyTorch CompareAccuracy module (no parameters)."""

    def __init__(self, reduction="mean", acc_name="accuracy_cmp"):
        self.reduction = reduction
        self._acc_name = acc_name

    @property
    def acc_name(self):
        return self._acc_name

    def forward(self, pred, target, indices, indices_type=None, **kwargs):
        return accuracy_cmp(pred, target, indices, indices_type,
                            prefix=self.acc_name)

    __call__ = forward


def _reference(pred, label, indices, indices_type, prefix):
    """Pure-JAX reference mirroring the PyTorch loop semantics."""
    B, N, _ = pred.shape
    G = indices.shape[1] - 1
    err = jnp.sqrt(jnp.sum((pred.astype(jnp.float32)
                            - label.astype(jnp.float32)) ** 2, axis=-1))  # [B, N]
    per_type = {name: [] for name in GARMENT_TYPE}
    for b in range(B):
        for g in range(G):
            start = int(indices[b, g])
            end = int(indices[b, g + 1])
            if end <= start:
                continue
            t = int(jnp.argmax(indices_type[b, g]))
            per_type[GARMENT_TYPE[t]].append(jnp.mean(err[b, start:end]))
    out = {}
    for name in GARMENT_TYPE:
        vals = per_type[name]
        out[f"{prefix}.{name}"] = (jnp.mean(jnp.stack(vals)) if vals
                                   else jnp.float32(0.0))
    return out


if __name__ == "__main__":
    key = jax.random.PRNGKey(0)
    T = len(GARMENT_TYPE)
    module = CompareAccuracy(acc_name="accuracy_cmp")

    # --- Case 1: B=2, N=2000 (ragged -> small 384-lane pad), G=3 -----------------
    B, N, G = 2, 2000, 3
    k1, k2, k3 = jax.random.split(key, 3)
    pred = jax.random.normal(k1, (B, N, 3), dtype=jnp.float32)
    target = jax.random.normal(k2, (B, N, 3), dtype=jnp.float32)
    indices = jnp.array([[0, 500, 1200, 2000],
                         [0, 640, 1400, 2000]], dtype=jnp.int32)
    type_ids = jax.random.randint(k3, (B, G), 0, T)
    indices_type = jax.nn.one_hot(type_ids, T, dtype=jnp.float32)

    # Multi-tile path (rows_per_tile=8 -> 2 row tiles): exercises the
    # accumulate-across-tiles + pl.when finalize logic at a small size.
    acc_tiled = accuracy_cmp(pred, target, indices, indices_type,
                             prefix=module.acc_name, rows_per_tile=8)
    acc_tiled = jax.tree_util.tree_map(jax.block_until_ready, acc_tiled)

    # Default single-tile path via the module interface.
    acc_mod = module(pred, target, indices=indices, indices_type=indices_type)
    acc_mod = jax.tree_util.tree_map(jax.block_until_ready, acc_mod)

    ref = _reference(pred, target, indices, indices_type, prefix="accuracy_cmp")
    for k in ref:
        assert jnp.allclose(acc_tiled[k], ref[k], atol=1e-4, rtol=1e-3), (
            "tiled", k, acc_tiled[k], ref[k])
        assert jnp.allclose(acc_mod[k], ref[k], atol=1e-4, rtol=1e-3), (
            "module", k, acc_mod[k], ref[k])

    # --- Case 2: rows_total=9 with tile=8 -> partial trailing row tile; one empty
    # garment slot (start == end) exercises the validity guard ---------------------
    B2, N2, G2 = 2, 1100, 2
    k4, k5, k6 = jax.random.split(jax.random.PRNGKey(1), 3)
    pred2 = jax.random.normal(k4, (B2, N2, 3), dtype=jnp.float32)
    target2 = jax.random.normal(k5, (B2, N2, 3), dtype=jnp.float32)
    indices2 = jnp.array([[0, 430, 1100],
                          [0, 1100, 1100]], dtype=jnp.int32)
    type_ids2 = jax.random.randint(k6, (B2, G2), 0, T)
    indices_type2 = jax.nn.one_hot(type_ids2, T, dtype=jnp.float32)

    acc2 = accuracy_cmp(pred2, target2, indices2, indices_type2,
                        prefix="accuracy_cmp", rows_per_tile=8)
    acc2 = jax.tree_util.tree_map(jax.block_until_ready, acc2)
    ref2 = _reference(pred2, target2, indices2, indices_type2, prefix="accuracy_cmp")
    for k in ref2:
        assert jnp.allclose(acc2[k], ref2[k], atol=1e-4, rtol=1e-3), (
            "ragged", k, acc2[k], ref2[k])

    print("KERNEL_OK")
</pallas_src>

<mosaic_0001>
module attributes {stable_mosaic.version = 11 : i64} {
  func.func @_garment_err_kernel(%arg0: i32, %arg1: i32, %arg2: memref<2x4xi32, #tpu.memory_space<smem>>, %arg3: memref<1x8x384xf32, #tpu.memory_space<vmem>>, %arg4: memref<1x8x384xf32, #tpu.memory_space<vmem>>, %arg5: memref<1x1x128xf32, #tpu.memory_space<vmem>>) attributes {dimension_semantics = [#tpu.dimension_semantics<parallel>, #tpu.dimension_semantics<arbitrary>], iteration_bounds = array<i64: 2, 2>, scalar_prefetch = 1 : i64, scratch_operands = 0 : i64, tpu.core_type = #tpu.core_type<tc>, window_params = [{transform_indices = @transform_0, window_bounds = array<i64: 1, 8, 384>}, {transform_indices = @transform_1, window_bounds = array<i64: 1, 8, 384>}, {transform_indices = @transform_2, window_bounds = array<i64: 1, 1, 128>}]} {
    %c0_i32 = arith.constant 0 : i32
    %0 = arith.cmpi eq, %arg1, %c0_i32 : i32
    %1 = arith.extui %0 : i1 to i32
    %c0_i32_0 = arith.constant 0 : i32
    %2 = arith.cmpi ne, %1, %c0_i32_0 : i32
    scf.if %2 {
      %cst_36 = arith.constant 0.000000e+00 : f32
      %109 = vector.broadcast %cst_36 : f32 to vector<1x1x128xf32>
      %c0_37 = arith.constant 0 : index
      %c0_38 = arith.constant 0 : index
      %c0_39 = arith.constant 0 : index
      %110 = vector.load %arg5[%c0_37, %c0_38, %c0_39] : memref<1x1x128xf32, #tpu.memory_space<vmem>>, vector<1x1x128xf32>
      tpu.vector_store %arg5[%c0_37, %c0_38, %c0_39], %109 {strides = array<i32>} : memref<1x1x128xf32, #tpu.memory_space<vmem>>, vector<1x1x128xf32>,
    } else {
    }
    %c0 = arith.constant 0 : index
    %c0_1 = arith.constant 0 : index
    %c0_2 = arith.constant 0 : index
    %3 = vector.load %arg3[%c0, %c0_1, %c0_2] : memref<1x8x384xf32, #tpu.memory_space<vmem>>, vector<1x8x384xf32>
    %4 = vector.shape_cast %3 : vector<1x8x384xf32> to vector<8x384xf32>
    %c0_3 = arith.constant 0 : index
    %c0_4 = arith.constant 0 : index
    %c0_5 = arith.constant 0 : index
    %5 = vector.load %arg4[%c0_3, %c0_4, %c0_5] : memref<1x8x384xf32, #tpu.memory_space<vmem>>, vector<1x8x384xf32>
    %6 = vector.shape_cast %5 : vector<1x8x384xf32> to vector<8x384xf32>
    %7 = arith.subf %4, %6 : vector<8x384xf32>
    %8 = arith.mulf %7, %7 : vector<8x384xf32>
    %c1_i32 = arith.constant 1 : i32
    %9 = tpu.dynamic_rotate %8 by %c1_i32 dim 1 : vector<8x384xf32>, i32 -> vector<8x384xf32>
    %10 = arith.addf %8, %9 : vector<8x384xf32>
    %c383_i32 = arith.constant 383 : i32
    %11 = tpu.dynamic_rotate %8 by %c383_i32 dim 1 : vector<8x384xf32>, i32 -> vector<8x384xf32>
    %12 = arith.addf %10, %11 : vector<8x384xf32>
    %13 = math.sqrt %12 : vector<8x384xf32>
    %14 = tpu.iota {dimensions = array<i32: 0>} : vector<8x384xi32>
    %15 = tpu.iota {dimensions = array<i32: 1>} : vector<8x384xi32>
    %c3072_i32 = arith.constant 3072 : i32
    %16 = arith.muli %arg1, %c3072_i32 : i32
    %c384_i32 = arith.constant 384 : i32
    %17 = vector.broadcast %c384_i32 : i32 to vector<8x384xi32>
    %18 = arith.muli %14, %17 : vector<8x384xi32>
    %19 = arith.addi %18, %15 : vector<8x384xi32>
    %20 = vector.broadcast %16 : i32 to vector<8x384xi32>
    %21 = arith.addi %20, %19 : vector<8x384xi32>
    %c3_i32 = arith.constant 3 : i32
    %c0_i32_6 = arith.constant 0 : i32
    %22 = arith.cmpi eq, %c3_i32, %c0_i32_6 : i32
    %c1_i32_7 = arith.constant 1 : i32
    %23 = arith.select %22, %c1_i32_7, %c3_i32 : i32
    %24 = vector.broadcast %23 : i32 to vector<8x384xi32>
    %25 = arith.remsi %15, %24 : vector<8x384xi32>
    %c0_i32_8 = arith.constant 0 : i32
    %26 = vector.broadcast %c0_i32_8 : i32 to vector<8x384xi32>
    %27 = arith.cmpi ne, %25, %26 : vector<8x384xi32>
    %c0_i32_9 = arith.constant 0 : i32
    %28 = vector.broadcast %c0_i32_9 : i32 to vector<8x384xi32>
    %29 = arith.cmpi slt, %25, %28 : vector<8x384xi32>
    %c0_i32_10 = arith.constant 0 : i32
    %30 = arith.cmpi slt, %23, %c0_i32_10 : i32
    %31 = vector.broadcast %30 : i1 to vector<8x384xi1>
    %32 = vector.broadcast %31 : vector<8x384xi1> to vector<8x384xi1>
    %33 = arith.xori %29, %32 : vector<8x384xi1>
    %34 = arith.andi %33, %27 : vector<8x384xi1>
    %35 = vector.broadcast %23 : i32 to vector<8x384xi32>
    %36 = arith.addi %25, %35 : vector<8x384xi32>
    %37 = arith.select %34, %36, %25 : vector<8x384xi1>, vector<8x384xi32>
    %c1_i32_11 = arith.constant 1 : i32
    %38 = vector.broadcast %c1_i32_11 : i32 to vector<8x384xi32>
    %39 = arith.cmpi eq, %37, %38 : vector<8x384xi32>
    %cst = arith.constant 0.000000e+00 : f32
    %40 = vector.broadcast %cst : f32 to vector<8x384xf32>
    %41 = arith.select %39, %13, %40 : vector<8x384xi1>, vector<8x384xf32>
    %42 = arith.index_cast %arg0 : i32 to index
    %c0_12 = arith.constant 0 : index
    %43 = memref.load %arg2[%42, %c0_12] : memref<2x4xi32, #tpu.memory_space<smem>>
    %c3_i32_13 = arith.constant 3 : i32
    %44 = arith.muli %c3_i32_13, %43 : i32
    %45 = vector.broadcast %44 : i32 to vector<8x384xi32>
    %46 = arith.cmpi slt, %21, %45 : vector<8x384xi32>
    %cst_14 = arith.constant 0.000000e+00 : f32
    %47 = vector.broadcast %cst_14 : f32 to vector<8x384xf32>
    %48 = arith.select %46, %41, %47 : vector<8x384xi1>, vector<8x384xf32>
    %49 = vector.shape_cast %48 : vector<8x384xf32> to vector<1x8x384xf32>
    %cst_15 = arith.constant dense<0.000000e+00> : vector<1xf32>
    %50 = vector.multi_reduction <add>, %49, %cst_15 [1, 2] : vector<1x8x384xf32> to vector<1xf32>
    %51 = vector.shape_cast %50 : vector<1xf32> to vector<1x1x1xf32>
    %52 = vector.extract %51[0, 0, 0] : f32 from vector<1x1x1xf32>
    %53 = arith.index_cast %arg0 : i32 to index
    %c1 = arith.constant 1 : index
    %54 = memref.load %arg2[%53, %c1] : memref<2x4xi32, #tpu.memory_space<smem>>
    %c3_i32_16 = arith.constant 3 : i32
    %55 = arith.muli %c3_i32_16, %54 : i32
    %56 = vector.broadcast %55 : i32 to vector<8x384xi32>
    %57 = arith.cmpi slt, %21, %56 : vector<8x384xi32>
    %cst_17 = arith.constant 0.000000e+00 : f32
    %58 = vector.broadcast %cst_17 : f32 to vector<8x384xf32>
    %59 = arith.select %57, %41, %58 : vector<8x384xi1>, vector<8x384xf32>
    %60 = vector.shape_cast %59 : vector<8x384xf32> to vector<1x8x384xf32>
    %cst_18 = arith.constant dense<0.000000e+00> : vector<1xf32>
    %61 = vector.multi_reduction <add>, %60, %cst_18 [1, 2] : vector<1x8x384xf32> to vector<1xf32>
    %62 = vector.shape_cast %61 : vector<1xf32> to vector<1x1x1xf32>
    %63 = vector.extract %62[0, 0, 0] : f32 from vector<1x1x1xf32>
    %64 = arith.index_cast %arg0 : i32 to index
    %c2 = arith.constant 2 : index
    %65 = memref.load %arg2[%64, %c2] : memref<2x4xi32, #tpu.memory_space<smem>>
    %c3_i32_19 = arith.constant 3 : i32
    %66 = arith.muli %c3_i32_19, %65 : i32
    %67 = vector.broadcast %66 : i32 to vector<8x384xi32>
    %68 = arith.cmpi slt, %21, %67 : vector<8x384xi32>
    %cst_20 = arith.constant 0.000000e+00 : f32
    %69 = vector.broadcast %cst_20 : f32 to vector<8x384xf32>
    %70 = arith.select %68, %41, %69 : vector<8x384xi1>, vector<8x384xf32>
    %71 = vector.shape_cast %70 : vector<8x384xf32> to vector<1x8x384xf32>
    %cst_21 = arith.constant dense<0.000000e+00> : vector<1xf32>
    %72 = vector.multi_reduction <add>, %71, %cst_21 [1, 2] : vector<1x8x384xf32> to vector<1xf32>
    %73 = vector.shape_cast %72 : vector<1xf32> to vector<1x1x1xf32>
    %74 = vector.extract %73[0, 0, 0] : f32 from vector<1x1x1xf32>
    %75 = arith.index_cast %arg0 : i32 to index
    %c3 = arith.constant 3 : index
    %76 = memref.load %arg2[%75, %c3] : memref<2x4xi32, #tpu.memory_space<smem>>
    %c3_i32_22 = arith.constant 3 : i32
    %77 = arith.muli %c3_i32_22, %76 : i32
    %78 = vector.broadcast %77 : i32 to vector<8x384xi32>
    %79 = arith.cmpi slt, %21, %78 : vector<8x384xi32>
    %cst_23 = arith.constant 0.000000e+00 : f32
    %80 = vector.broadcast %cst_23 : f32 to vector<8x384xf32>
    %81 = arith.select %79, %41, %80 : vector<8x384xi1>, vector<8x384xf32>
    %82 = vector.shape_cast %81 : vector<8x384xf32> to vector<1x8x384xf32>
    %cst_24 = arith.constant dense<0.000000e+00> : vector<1xf32>
    %83 = vector.multi_reduction <add>, %82, %cst_24 [1, 2] : vector<1x8x384xf32> to vector<1xf32>
    %84 = vector.shape_cast %83 : vector<1xf32> to vector<1x1x1xf32>
    %85 = vector.extract %84[0, 0, 0] : f32 from vector<1x1x1xf32>
    %86 = tpu.iota {dimensions = array<i32: 2>} : vector<1x1x128xi32>
    %cst_25 = arith.constant 0.000000e+00 : f32
    %87 = vector.broadcast %cst_25 : f32 to vector<1x1x128xf32>
    %c0_i32_26 = arith.constant 0 : i32
    %88 = vector.broadcast %c0_i32_26 : i32 to vector<1x1x128xi32>
    %89 = arith.cmpi eq, %86, %88 : vector<1x1x128xi32>
    %90 = arith.subf %63, %52 : f32
    %91 = vector.broadcast %90 : f32 to vector<1x1x128xf32>
    %92 = arith.select %89, %91, %87 : vector<1x1x128xi1>, vector<1x1x128xf32>
    %c1_i32_27 = arith.constant 1 : i32
    %93 = vector.broadcast %c1_i32_27 : i32 to vector<1x1x128xi32>
    %94 = arith.cmpi eq, %86, %93 : vector<1x1x128xi32>
    %95 = arith.subf %74, %63 : f32
    %96 = vector.broadcast %95 : f32 to vector<1x1x128xf32>
    %97 = arith.select %94, %96, %92 : vector<1x1x128xi1>, vector<1x1x128xf32>
    %c2_i32 = arith.constant 2 : i32
    %98 = vector.broadcast %c2_i32 : i32 to vector<1x1x128xi32>
    %99 = arith.cmpi eq, %86, %98 : vector<1x1x128xi32>
    %100 = arith.subf %85, %74 : f32
    %101 = vector.broadcast %100 : f32 to vector<1x1x128xf32>
    %102 = arith.select %99, %101, %97 : vector<1x1x128xi1>, vector<1x1x128xf32>
    %c0_28 = arith.constant 0 : index
    %c0_29 = arith.constant 0 : index
    %c0_30 = arith.constant 0 : index
    %103 = vector.load %arg5[%c0_28, %c0_29, %c0_30] : memref<1x1x128xf32, #tpu.memory_space<vmem>>, vector<1x1x128xf32>
    %104 = arith.addf %103, %102 : vector<1x1x128xf32>
    %c0_31 = arith.constant 0 : index
    %c0_32 = arith.constant 0 : index
    %c0_33 = arith.constant 0 : index
    %105 = vector.load %arg5[%c0_31, %c0_32, %c0_33] : memref<1x1x128xf32, #tpu.memory_space<vmem>>, vector<1x1x128xf32>
    tpu.vector_store %arg5[%c0_31, %c0_32, %c0_33], %104 {strides = array<i32>} : memref<1x1x128xf32, #tpu.memory_space<vmem>>, vector<1x1x128xf32>,
    %c1_i32_34 = arith.constant 1 : i32
    %106 = arith.cmpi eq, %arg1, %c1_i32_34 : i32
    %107 = arith.extui %106 : i1 to i32
    %c0_i32_35 = arith.constant 0 : i32
    %108 = arith.cmpi ne, %107, %c0_i32_35 : i32
    scf.if %108 {
      %cst_36 = arith.constant 1.000000e+00 : f32
      %109 = vector.broadcast %cst_36 : f32 to vector<1x1x128xf32>
      %110 = arith.index_cast %arg0 : i32 to index
      %c1_37 = arith.constant 1 : index
      %111 = memref.load %arg2[%110, %c1_37] : memref<2x4xi32, #tpu.memory_space<smem>>
      %112 = arith.index_cast %arg0 : i32 to index
      %c0_38 = arith.constant 0 : index
      %113 = memref.load %arg2[%112, %c0_38] : memref<2x4xi32, #tpu.memory_space<smem>>
      %114 = arith.subi %111, %113 : i32
      %c1_i32_39 = arith.constant 1 : i32
      %115 = arith.maxsi %114, %c1_i32_39 : i32
      %c0_i32_40 = arith.constant 0 : i32
      %116 = vector.broadcast %c0_i32_40 : i32 to vector<1x1x128xi32>
      %117 = arith.cmpi eq, %86, %116 : vector<1x1x128xi32>
      %118 = arith.sitofp %115 : i32 to f32
      %119 = vector.broadcast %118 : f32 to vector<1x1x128xf32>
      %120 = arith.select %117, %119, %109 : vector<1x1x128xi1>, vector<1x1x128xf32>
      %121 = arith.index_cast %arg0 : i32 to index
      %c2_41 = arith.constant 2 : index
      %122 = memref.load %arg2[%121, %c2_41] : memref<2x4xi32, #tpu.memory_space<smem>>
      %123 = arith.index_cast %arg0 : i32 to index
      %c1_42 = arith.constant 1 : index
      %124 = memref.load %arg2[%123, %c1_42] : memref<2x4xi32, #tpu.memory_space<smem>>
      %125 = arith.subi %122, %124 : i32
      %c1_i32_43 = arith.constant 1 : i32
      %126 = arith.maxsi %125, %c1_i32_43 : i32
      %c1_i32_44 = arith.constant 1 : i32
      %127 = vector.broadcast %c1_i32_44 : i32 to vector<1x1x128xi32>
      %128 = arith.cmpi eq, %86, %127 : vector<1x1x128xi32>
      %129 = arith.sitofp %126 : i32 to f32
      %130 = vector.broadcast %129 : f32 to vector<1x1x128xf32>
      %131 = arith.select %128, %130, %120 : vector<1x1x128xi1>, vector<1x1x128xf32>
      %132 = arith.index_cast %arg0 : i32 to index
      %c3_45 = arith.constant 3 : index
      %133 = memref.load %arg2[%132, %c3_45] : memref<2x4xi32, #tpu.memory_space<smem>>
      %134 = arith.index_cast %arg0 : i32 to index
      %c2_46 = arith.constant 2 : index
      %135 = memref.load %arg2[%134, %c2_46] : memref<2x4xi32, #tpu.memory_space<smem>>
      %136 = arith.subi %133, %135 : i32
      %c1_i32_47 = arith.constant 1 : i32
      %137 = arith.maxsi %136, %c1_i32_47 : i32
      %c2_i32_48 = arith.constant 2 : i32
      %138 = vector.broadcast %c2_i32_48 : i32 to vector<1x1x128xi32>
      %139 = arith.cmpi eq, %86, %138 : vector<1x1x128xi32>
      %140 = arith.sitofp %137 : i32 to f32
      %141 = vector.broadcast %140 : f32 to vector<1x1x128xf32>
      %142 = arith.select %139, %141, %131 : vector<1x1x128xi1>, vector<1x1x128xf32>
      %c0_49 = arith.constant 0 : index
      %c0_50 = arith.constant 0 : index
      %c0_51 = arith.constant 0 : index
      %143 = vector.load %arg5[%c0_49, %c0_50, %c0_51] : memref<1x1x128xf32, #tpu.memory_space<vmem>>, vector<1x1x128xf32>
      %144 = arith.divf %143, %142 : vector<1x1x128xf32>
      %c0_52 = arith.constant 0 : index
      %c0_53 = arith.constant 0 : index
      %c0_54 = arith.constant 0 : index
      %145 = vector.load %arg5[%c0_52, %c0_53, %c0_54] : memref<1x1x128xf32, #tpu.memory_space<vmem>>, vector<1x1x128xf32>
      tpu.vector_store %arg5[%c0_52, %c0_53, %c0_54], %144 {strides = array<i32>} : memref<1x1x128xf32, #tpu.memory_space<vmem>>, vector<1x1x128xf32>,
    } else {
    }
    return
  }
  func.func @transform_0(%arg0: i32, %arg1: i32, %arg2: memref<2x4xi32, #tpu.memory_space<smem>>) -> (i32, i32, i32) {
    %c0_i32 = arith.constant 0 : i32
    %c0_i32_0 = arith.constant 0 : i32
    return %arg0, %arg1, %c0_i32 : i32, i32, i32
  }
  func.func @transform_1(%arg0: i32, %arg1: i32, %arg2: memref<2x4xi32, #tpu.memory_space<smem>>) -> (i32, i32, i32) {
    %c0_i32 = arith.constant 0 : i32
    %c0_i32_0 = arith.constant 0 : i32
    return %arg0, %arg1, %c0_i32 : i32, i32, i32
  }
  func.func @transform_2(%arg0: i32, %arg1: i32, %arg2: memref<2x4xi32, #tpu.memory_space<smem>>) -> (i32, i32, i32) {
    %c0_i32 = arith.constant 0 : i32
    %c0_i32_0 = arith.constant 0 : i32
    %c0_i32_1 = arith.constant 0 : i32
    return %arg0, %c0_i32, %c0_i32_0 : i32, i32, i32
  }
}

</mosaic_0001>

<llo_original>
// kernel: tpu_custom_call.1
$region0: #{tpu_custom_call.1}
  #allocation0 [shape = 'u32[]', space=smem, size = 0x4, offset = 0x4, fixed_abs, tag = 'smem constant byte address 0x4 - core index']
  #allocation1 [shape = 'u32[144,128]{1,0:T(1,128)}', space=vmem, size = 0x12000, scoped, tag = 'internal scratch']
  #allocation2 [shape = 's32[1]{0}', space=sflag, size = 0x4, scoped, tag = 'scoped memory for tpu_custom_call.1']
  #allocation3 [shape = 'u8[1024]{0}', space=smem, size = 0x400, scoped, tag = 'prefetched SMEM operand 0']
  %s0 = inlined_call_operand.hbm [shape: s32[2,4], index: 0, kind: input, shape index: {}]
  %s1 = inlined_call_operand.hbm [shape: f32[2,16,384], index: 1, kind: input, shape index: {}]
  %s2 = inlined_call_operand.hbm [shape: f32[2,16,384], index: 2, kind: input, shape index: {}]
  %s3 = inlined_call_operand.hbm [shape: f32[2,1,128], index: 3, kind: output, shape index: {}]
  %s4 = sld [smem:[#allocation0]]
  $region57: #{tpu_custom_call.1} parent=0
    _
  %s6 = ssub.s32 1, %s4
  %s7 = scalar_select 0, %s6, %s4
  %9 = dma.hbm_to_smem %s0, 32, [#allocation3], [#allocation2]
  %10 = dma.done [#allocation2], 32
  %11 = sfence
  $region1: #{tpu_custom_call.1} parent=0
    #allocation4 [shape = 'u8[24576]{0}', space=vmem, size = 0x6000, scoped, tag = 'input window, operand 1']
    #allocation5 [shape = 's32[2]{0}', space=sflag, size = 0x8, scoped, tag = 'scoped memory for tpu_custom_call.1']
    #allocation6 [shape = 's32[2]{0}', space=sflag, size = 0x8, scoped, tag = 'scoped memory for tpu_custom_call.1']
    #allocation7 [shape = 'u8[24576]{0}', space=vmem, size = 0x6000, scoped, tag = 'input window, operand 2']
    #allocation8 [shape = 's32[2]{0}', space=sflag, size = 0x8, scoped, tag = 'scoped memory for tpu_custom_call.1']
    #allocation9 [shape = 'u8[1024]{0}', space=vmem, size = 0x400, scoped, tag = 'output window, operand 0']
    %12 = vsyncpa [#allocation5], 0
    %s13 = scalar_lea.sflag [#allocation5], 1
    %14 = vsyncpa %s13, 0
    %15 = vsyncpa [#allocation8], 0
    %s16 = scalar_lea.sflag [#allocation8], 1
    %17 = vsyncpa %s16, 0
    %18 = vsyncpa [#allocation6], 0
    %s19 = scalar_lea.sflag [#allocation6], 1
    %20 = vsyncpa %s19, 0
    loop: start=0, step=1, limit=6
    $region2: #{tpu_custom_call.1} parent=1 // loop_pre_header
      _
    $region3: #{tpu_custom_call.1} parent=1 // loop_header
      %s22 = sphi 0, %s26
      %p23 = scmp.ge.s32.totalorder %s22, 6
      %s29 = sphi 0, %s41
      %s30 = sphi 0, %s37
      %s31 = sphi 0, %s29
      %s32 = sphi 0, %s30
      %s33 = sphi 0, %s31
      %s34 = sphi 0, %s32
      %s46 = sphi 0, %s48
      %s49 = sphi 0, %s46
      %s50 = sphi 0, %s49
      %s66 = sphi 0, %s50
      %s74 = sphi 0, %s76
      %s77 = sphi 0, %s74
      %s78 = sphi 0, %s77
      %s94 = sphi 0, %s78
      %s100 = sphi 0, %s102
      %s103 = sphi 0, %s100
      %s104 = sphi 0, %s103
      %s120 = sphi 0, %s104
    $region4: #{tpu_custom_call.1} parent=1 // loop_header_branch
      %25 = sbr.rel (%p23) target = $region8
    $region5: #{tpu_custom_call.1} parent=1 // loop_body
      %s27 = ssub.s32 %s22, 1
      %s28 = ssub.s32 %s22, 2
      %s35 = sadd.s32 1, %s30
      %p36 = scmp.ge.s32.totalorder %s35, 2
      %s37 = scalar_select %p36, 0, %s35
      %s38 = sadd.s32 1, %s29
      %s39 = scalar_select %p36, %s38, %s29
      %p40 = scmp.ge.s32.totalorder %s39, 2
      %s41 = scalar_select %p40, 0, %s39
      %s42 = ssub.s32 %s29, %s41
      %s43 = ssub.s32 %s30, %s37
      %s44 = sor.u32 %s42, %s43
      %p45 = scmp.eq.s32.totalorder %s44, 0
      %s47 = sadd.s32 %s46, 1
      %s48 = scalar_select %p45, %s46, %s47
      %p51 = pneg %p45
      %p52 = scmp.eq.s32.totalorder %s22, 3
      %p53 = por %p51, %p52
      %p54 = scmp.ne.s32.totalorder %s46, %s49
      %p55 = scmp.eq.s32.totalorder %s22, 0
      %p56 = por %p54, %p55
      %p57 = scmp.ne.s32.totalorder %s46, %s49
      %p58 = scmp.eq.s32.totalorder %s27, 3
      %p59 = por %p57, %p58
      %p60 = scmp.ne.s32.totalorder %s49, %s50
      %p61 = scmp.eq.s32.totalorder %s27, 0
      %p62 = por %p60, %p61
      %p63 = scmp.ne.s32.totalorder %s49, %s50
      %p64 = scmp.eq.s32.totalorder %s28, 3
      %p65 = por %p63, %p64
      %p67 = scmp.ne.s32.totalorder %s50, %s66
      %p68 = scmp.eq.s32.totalorder %s28, 0
      %p69 = por %p67, %p68
      %s70 = ssub.s32 %s29, %s41
      %s71 = ssub.s32 %s30, %s37
      %s72 = sor.u32 %s70, %s71
      %p73 = scmp.eq.s32.totalorder %s72, 0
      %s75 = sadd.s32 %s74, 1
      %s76 = scalar_select %p73, %s74, %s75
      %p79 = pneg %p73
      %p80 = scmp.eq.s32.totalorder %s22, 3
      %p81 = por %p79, %p80
      %p82 = scmp.ne.s32.totalorder %s74, %s77
      %p83 = scmp.eq.s32.totalorder %s22, 0
      %p84 = por %p82, %p83
      %p85 = scmp.ne.s32.totalorder %s74, %s77
      %p86 = scmp.eq.s32.totalorder %s27, 3
      %p87 = por %p85, %p86
      %p88 = scmp.ne.s32.totalorder %s77, %s78
      %p89 = scmp.eq.s32.totalorder %s27, 0
      %p90 = por %p88, %p89
      %p91 = scmp.ne.s32.totalorder %s77, %s78
      %p92 = scmp.eq.s32.totalorder %s28, 3
      %p93 = por %p91, %p92
      %p95 = scmp.ne.s32.totalorder %s78, %s94
      %p96 = scmp.eq.s32.totalorder %s28, 0
      %p97 = por %p95, %p96
      %s98 = ssub.s32 %s29, %s41
      %p99 = scmp.eq.s32.totalorder %s98, 0
      %s101 = sadd.s32 %s100, 1
      %s102 = scalar_select %p99, %s100, %s101
      %p105 = pneg %p99
      %p106 = scmp.eq.s32.totalorder %s22, 3
      %p107 = por %p105, %p106
      %p108 = scmp.ne.s32.totalorder %s100, %s103
      %p109 = scmp.eq.s32.totalorder %s22, 0
      %p110 = por %p108, %p109
      %p111 = scmp.ne.s32.totalorder %s100, %s103
      %p112 = scmp.eq.s32.totalorder %s27, 3
      %p113 = por %p111, %p112
      %p114 = scmp.ne.s32.totalorder %s103, %s104
      %p115 = scmp.eq.s32.totalorder %s27, 0
      %p116 = por %p114, %p115
      %p117 = scmp.ne.s32.totalorder %s103, %s104
      %p118 = scmp.eq.s32.totalorder %s28, 3
      %p119 = por %p117, %p118
      %p121 = scmp.ne.s32.totalorder %s104, %s120
      %p122 = scmp.eq.s32.totalorder %s28, 0
      %p123 = por %p121, %p122
      %p124 = scmp.le.s32.totalorder 1, %s22
      %p125 = scmp.lt.s32.totalorder %s22, 5
      %p126 = pnand %p124, %p125
      %p127 = pneg %p126
      // Predicated region
      $region9: #{tpu_custom_call.1} parent=5 // pred_check
        _
      $region10: #{tpu_custom_call.1} parent=5 // pred_check_branch
        %129 = sbr.rel (%p126) target = $region12
      $region11: #{tpu_custom_call.1} parent=5 // pred_region
        %s130 = ssub.s32 %s22, 1
      $region12: #{tpu_custom_call.1} parent=5 // pred_fallthru
        _
      %p131 = scmp.lt.s32.totalorder %s22, 4
      // Predicated region
      $region13: #{tpu_custom_call.1} parent=5 // pred_check
        %p132 = pneg %p131
      $region14: #{tpu_custom_call.1} parent=5 // pred_check_branch
        %134 = sbr.rel (%p132) target = $region16
      $region15: #{tpu_custom_call.1} parent=5 // pred_region
        // Predicated region
        $region17: #{tpu_custom_call.1} parent=15 // pred_check
          %p135 = pneg %p56
        $region18: #{tpu_custom_call.1} parent=15 // pred_check_branch
          %137 = sbr.rel (%p135) target = $region20
        $region19: #{tpu_custom_call.1} parent=15 // pred_region
          %s138 = sand.u32 %s46, 1
          %s139 = scalar_lea.sflag [#allocation5], %s138
          %s140 = sand.u32 %s46, 1
          %s141 = smul.addr %s140, 24
          %s142 = scalar_lea.vmem [#allocation4], %s141
          %s144 = ssub.s32 384, 384
          %145 = vsyncadd %s139, %s144
          %s146 = smul.addr %s30, 3
          %s147 = smul.addr %s29, 6
          %s148 = sadd.s32 %s146, %s147
          %s149 = smul.addr %s148, 128
          %s150 = scalar_lea.hbm %s1, %s149
          %s152 = sshll.u32 %s142, 4
          %s153 = int_to_ptr.vmem [resolvable:$true] %s152
          %155 = dma.hbm_to_vmem [thread:$0]  %s150, 384, %s153, %s139
        $region20: #{tpu_custom_call.1} parent=15 // pred_fallthru
          _
        // Predicated region
        $region21: #{tpu_custom_call.1} parent=15 // pred_check
          %p156 = pneg %p84
        $region22: #{tpu_custom_call.1} parent=15 // pred_check_branch
          %158 = sbr.rel (%p156) target = $region24
        $region23: #{tpu_custom_call.1} parent=15 // pred_region
          %s159 = sand.u32 %s74, 1
          %s160 = scalar_lea.sflag [#allocation8], %s159
          %s161 = sand.u32 %s74, 1
          %s162 = smul.addr %s161, 24
          %s163 = scalar_lea.vmem [#allocation7], %s162
          %s165 = ssub.s32 384, 384
          %166 = vsyncadd %s160, %s165
          %s167 = smul.addr %s30, 3
          %s168 = smul.addr %s29, 6
          %s169 = sadd.s32 %s167, %s168
          %s170 = smul.addr %s169, 128
          %s171 = scalar_lea.hbm %s2, %s170
          %s173 = sshll.u32 %s163, 4
          %s174 = int_to_ptr.vmem [resolvable:$true] %s173
          %176 = dma.hbm_to_vmem [thread:$0]  %s171, 384, %s174, %s160
        $region24: #{tpu_custom_call.1} parent=15 // pred_fallthru
          _
      $region16: #{tpu_custom_call.1} parent=5 // pred_fallthru
        _
      %p177 = scmp.le.s32.totalorder 1, %s22
      %p178 = scmp.lt.s32.totalorder %s22, 5
      %p179 = pnand %p177, %p178
      %p180 = pneg %p179
      // Predicated region
      $region25: #{tpu_custom_call.1} parent=5 // pred_check
        _
      $region26: #{tpu_custom_call.1} parent=5 // pred_check_branch
        %182 = sbr.rel (%p179) target = $region28
      $region27: #{tpu_custom_call.1} parent=5 // pred_region
        %s183 = ssub.s32 %s22, 1
        %s184 = sand.u32 %s49, 1
        %s185 = scalar_lea.sflag [#allocation5], %s184
        %s186 = sand.u32 %s49, 1
        %s187 = smul.addr %s186, 24
        %s188 = scalar_lea.vmem [#allocation4], %s187
        // Predicated region
        $region29: #{tpu_custom_call.1} parent=27 // pred_check
          %p189 = pneg %p62
        $region30: #{tpu_custom_call.1} parent=27 // pred_check_branch
          %191 = sbr.rel (%p189) target = $region32
        $region31: #{tpu_custom_call.1} parent=27 // pred_region
          %192 = dma.done %s185, 384
        $region32: #{tpu_custom_call.1} parent=27 // pred_fallthru
          _
        %s193 = sand.u32 %s77, 1
        %s194 = scalar_lea.sflag [#allocation8], %s193
        %s195 = sand.u32 %s77, 1
        %s196 = smul.addr %s195, 24
        %s197 = scalar_lea.vmem [#allocation7], %s196
        // Predicated region
        $region33: #{tpu_custom_call.1} parent=27 // pred_check
          %p198 = pneg %p90
        $region34: #{tpu_custom_call.1} parent=27 // pred_check_branch
          %200 = sbr.rel (%p198) target = $region36
        $region35: #{tpu_custom_call.1} parent=27 // pred_region
          %201 = dma.done %s194, 384
        $region36: #{tpu_custom_call.1} parent=27 // pred_fallthru
          _
        %s202 = sand.u32 %s49, 1
        %s203 = scalar_lea.sflag [#allocation5], %s202
        %s204 = sand.u32 %s49, 1
        %s205 = smul.addr %s204, 24
        %s206 = scalar_lea.vmem [#allocation4], %s205
        %p207 = pneg %p62
        %p208 = pneg %p59
        %s209 = sand.u32 %s77, 1
        %s210 = scalar_lea.sflag [#allocation8], %s209
        %s211 = sand.u32 %s77, 1
        %s212 = smul.addr %s211, 24
        %s213 = scalar_lea.vmem [#allocation7], %s212
        %p214 = pneg %p90
        %p215 = pneg %p87
        %p216 = pneg %p116
        %p217 = pneg %p113
        %s218 = sand.u32 %s103, 1
        %s219 = scalar_lea.sflag [#allocation6], %s218
        %s220 = sand.u32 %s103, 1
        %s221 = scalar_lea.vmem [#allocation9], %s220
        %p222 = scmp.eq.s32.totalorder %s32, 0
        // Predicated region
        $region37: #{tpu_custom_call.1} parent=27 // pred_check
          %p223 = pneg %p222
        $region38: #{tpu_custom_call.1} parent=27 // pred_check_branch
          %225 = sbr.rel (%p223) target = $region40
        $region39: #{tpu_custom_call.1} parent=27 // pred_region
          %226 = vst [vmem:[%s221] sm:$0x1] 0.0
        $region40: #{tpu_custom_call.1} parent=27 // pred_fallthru
          _
        %v227 = vld [vmem:[%s188] sm:$0xff]
        %v228 = vld [vmem:[%s188 + $0x8] sm:$0xff]
        %v229 = vld [vmem:[%s188 + $0x10] sm:$0xff]
        %v230 = vld [vmem:[%s197] sm:$0xff]
        %v231 = vld [vmem:[%s197 + $0x8] sm:$0xff]
        %v232 = vld [vmem:[%s197 + $0x10] sm:$0xff]
        %v233 = vsub.f32 %v227, %v230
        %v234 = vsub.f32 %v228, %v231
        %v235 = vsub.f32 %v229, %v232
        %v236 = vmul.f32 %v233, %v233
        %v237 = vmul.f32 %v234, %v234
        %v238 = vmul.f32 %v235, %v235
        %239 = vrot.lane.b32.xlu0 %v236, 1
        %v240 = vpop.permute.xlu0 %239
        %241 = vrot.lane.b32.xlu0 %v237, 1
        %v242 = vpop.permute.xlu0 %241
        %243 = vrot.lane.b32.xlu0 %v238, 1
        %v244 = vpop.permute.xlu0 %243
        %v245 = vlaneseq
        %v246 = vand.u32 %v245, 127
        %vm247 = vcmp.lt.s32.totalorder %v246, 1
        %v248 = vsel %vm247, %v242, %v244
        %v249 = vsel %vm247, %v240, %v242
        %v250 = vsel %vm247, %v244, %v240
        %v251 = vadd.f32 %v236, %v250
        %v252 = vadd.f32 %v237, %v249
        %v253 = vadd.f32 %v238, %v248
        %254 = vrot.lane.b32.xlu0 %v236, 127
        %v255 = vpop.permute.xlu0 %254
        %256 = vrot.lane.b32.xlu0 %v237, 127
        %v257 = vpop.permute.xlu0 %256
        %258 = vrot.lane.b32.xlu0 %v238, 127
        %v259 = vpop.permute.xlu0 %258
        %vm260 = vcmp.lt.s32.totalorder %v246, 127
        %v261 = vsel %vm260, %v257, %v259
        %v262 = vsel %vm260, %v255, %v257
        %v263 = vsel %vm260, %v259, %v255
        %v264 = vadd.f32 %v251, %v262
        %v265 = vadd.f32 %v252, %v261
        %v266 = vadd.f32 %v253, %v263
        %v267 = vrsqrt.pop %v264
        %v268 = vmul.f32 %v264, %v267
        %vm269 = vcmp.eq.f32.partialorder %v264, inf
        %v270 = vsel %vm269, %v264, %v268
        %vm271 = vcmp.eq.f32.partialorder %v264, 0.0
        %v272 = vand.u32 %v264, 2147483648
        %v273 = vsel %vm271, %v272, %v270
        %v274 = vrsqrt.pop %v265
        %v275 = vmul.f32 %v265, %v274
        %vm276 = vcmp.eq.f32.partialorder %v265, inf
        %v277 = vsel %vm276, %v265, %v275
        %vm278 = vcmp.eq.f32.partialorder %v265, 0.0
        %v279 = vand.u32 %v265, 2147483648
        %v280 = vsel %vm278, %v279, %v277
        %v281 = vrsqrt.pop %v266
        %v282 = vmul.f32 %v266, %v281
        %vm283 = vcmp.eq.f32.partialorder %v266, inf
        %v284 = vsel %vm283, %v266, %v282
        %vm285 = vcmp.eq.f32.partialorder %v266, 0.0
        %v286 = vand.u32 %v266, 2147483648
        %v287 = vsel %vm285, %v286, %v284
        %v288 = vlaneseq
        %v289 = vshrl.u32 %v288, 7
        %v290 = vadd.s32 %v246, 128
        %v291 = vadd.s32 %v246, 256
        %s292 = smul.u32 %s32, 3072
        %v293 = vmul.u32 %v289, 384
        %v294 = vadd.s32 %v293, %v246
        %v295 = vadd.s32 %v293, %v290
        %v296 = vadd.s32 %v293, %v291
        %v297 = vstv %s292
        %v298 = vadd.s32 %v297, %v294
        %v299 = vadd.s32 %v297, %v295
        %v300 = vadd.s32 %v297, %v296
        %vm301 = vcmp.lt.s32.totalorder %v246, 0
        %v302 = vsub.s32 0, %v246
        %v303 = vsel %vm301, %v302, %v246
        %v304 = vmul.u32.u64.compose %v303, 2863311531
        %v305 = vextract.low.u32 %v304
        %v306 = vextract.high.u32 %v304
        %v307 = vshrl.u32 %v306, 1
        %v308 = vmul.u32 %v307, 3
        %v309 = vsub.s32 %v303, %v308
        %v310 = vsub.s32 0, %v309
        %v311 = vsel %vm301, %v310, %v309
        %vm312 = vcmp.lt.s32.totalorder %v290, 0
        %v313 = vsub.s32 0, %v290
        %v314 = vsel %vm312, %v313, %v290
        %v315 = vmul.u32.u64.compose %v314, 2863311531
        %v316 = vextract.low.u32 %v315
        %v317 = vextract.high.u32 %v315
        %v318 = vshrl.u32 %v317, 1
        %v319 = vmul.u32 %v318, 3
        %v320 = vsub.s32 %v314, %v319
        %v321 = vsub.s32 0, %v320
        %v322 = vsel %vm312, %v321, %v320
        %vm323 = vcmp.lt.s32.totalorder %v291, 0
        %v324 = vsub.s32 0, %v291
        %v325 = vsel %vm323, %v324, %v291
        %v326 = vmul.u32.u64.compose %v325, 2863311531
        %v327 = vextract.low.u32 %v326
        %v328 = vextract.high.u32 %v326
        %v329 = vshrl.u32 %v328, 1
        %v330 = vmul.u32 %v329, 3
        %v331 = vsub.s32 %v325, %v330
        %v332 = vsub.s32 0, %v331
        %v333 = vsel %vm323, %v332, %v331
        %vm334 = vcmp.ne.s32.totalorder %v311, 0
        %vm335 = vcmp.ne.s32.totalorder %v322, 0
        %vm336 = vcmp.ne.s32.totalorder %v333, 0
        %vm337 = vcmp.lt.s32.totalorder %v311, 0
        %vm338 = vcmp.lt.s32.totalorder %v322, 0
        %vm339 = vcmp.lt.s32.totalorder %v333, 0
        %vm340 = vmand %vm337, %vm334
        %vm341 = vmand %vm338, %vm335
        %vm342 = vmand %vm339, %vm336
        %v343 = vadd.s32 %v311, 3
        %v344 = vadd.s32 %v322, 3
        %v345 = vadd.s32 %v333, 3
        %v346 = vsel %vm340, %v343, %v311
        %v347 = vsel %vm341, %v344, %v322
        %v348 = vsel %vm342, %v345, %v333
        %vm349 = vcmp.eq.s32.totalorder %v346, 1
        %vm350 = vcmp.eq.s32.totalorder %v347, 1
        %vm351 = vcmp.eq.s32.totalorder %v348, 1
        %v352 = vsel %vm349, %v273, 0.0
        %v353 = vsel %vm350, %v280, 0.0
        %v354 = vsel %vm351, %v287, 0.0
        %s355 = smul.u32 %s31, 128
        %s356 = sld [smem:[#allocation3 + %s355]]
        %s357 = smul.u32 %s356, 3
        %v358 = vstv %s357
        %vm359 = vcmp.lt.s32.totalorder %v298, %v358
        %vm360 = vcmp.lt.s32.totalorder %v299, %v358
        %vm361 = vcmp.lt.s32.totalorder %v300, %v358
        %v362 = vsel %vm359, %v352, 0.0
        %v363 = vsel %vm360, %v353, 0.0
        %v364 = vsel %vm361, %v354, 0.0
        %v365 = vadd.f32 %v362, %v363
        %v366 = vadd.f32 %v365, %v364
        %367 = vadd.xlane.f32.xlu0 %v366
        %v368 = vpop.xlane.xlu0 %367
        %v369 = vrot.slane %v368, 4
        %v370 = vadd.f32 %v368, %v369
        %v371 = vrot.slane %v370, 2
        %v372 = vadd.f32 %v370, %v371
        %v373 = vrot.slane %v372, 1
        %v374 = vadd.f32 %v372, %v373
        %s375 = vtos %v374
        %s376 = sadd.s32 %s355, 1
        %s377 = sld [smem:[#allocation3 + %s376]]
        %s378 = smul.u32 %s377, 3
        %v379 = vstv %s378
        %vm380 = vcmp.lt.s32.totalorder %v298, %v379
        %vm381 = vcmp.lt.s32.totalorder %v299, %v379
        %vm382 = vcmp.lt.s32.totalorder %v300, %v379
        %v383 = vsel %vm380, %v352, 0.0
        %v384 = vsel %vm381, %v353, 0.0
        %v385 = vsel %vm382, %v354, 0.0
        %v386 = vadd.f32 %v383, %v384
        %v387 = vadd.f32 %v386, %v385
        %388 = vadd.xlane.f32.xlu0 %v387
        %v389 = vpop.xlane.xlu0 %388
        %v390 = vrot.slane %v389, 4
        %v391 = vadd.f32 %v389, %v390
        %v392 = vrot.slane %v391, 2
        %v393 = vadd.f32 %v391, %v392
        %v394 = vrot.slane %v393, 1
        %v395 = vadd.f32 %v393, %v394
        %s396 = vtos %v395
        %s397 = sadd.s32 %s355, 2
        %s398 = sld [smem:[#allocation3 + %s397]]
        %s399 = smul.u32 %s398, 3
        %v400 = vstv %s399
        %vm401 = vcmp.lt.s32.totalorder %v298, %v400
        %vm402 = vcmp.lt.s32.totalorder %v299, %v400
        %vm403 = vcmp.lt.s32.totalorder %v300, %v400
        %v404 = vsel %vm401, %v352, 0.0
        %v405 = vsel %vm402, %v353, 0.0
        %v406 = vsel %vm403, %v354, 0.0
        %v407 = vadd.f32 %v404, %v405
        %v408 = vadd.f32 %v407, %v406
        %409 = vadd.xlane.f32.xlu0 %v408
        %v410 = vpop.xlane.xlu0 %409
        %v411 = vrot.slane %v410, 4
        %v412 = vadd.f32 %v410, %v411
        %v413 = vrot.slane %v412, 2
        %v414 = vadd.f32 %v412, %v413
        %v415 = vrot.slane %v414, 1
        %v416 = vadd.f32 %v414, %v415
        %s417 = vtos %v416
        %s418 = sadd.s32 %s355, 3
        %s419 = sld [smem:[#allocation3 + %s418]]
        %s420 = smul.u32 %s419, 3
        %v421 = vstv %s420
        %vm422 = vcmp.lt.s32.totalorder %v298, %v421
        %vm423 = vcmp.lt.s32.totalorder %v299, %v421
        %vm424 = vcmp.lt.s32.totalorder %v300, %v421
        %v425 = vsel %vm422, %v352, 0.0
        %v426 = vsel %vm423, %v353, 0.0
        %v427 = vsel %vm424, %v354, 0.0
        %v428 = vadd.f32 %v425, %v426
        %v429 = vadd.f32 %v428, %v427
        %430 = vadd.xlane.f32.xlu0 %v429
        %v431 = vpop.xlane.xlu0 %430
        %v432 = vrot.slane %v431, 4
        %v433 = vadd.f32 %v431, %v432
        %v434 = vrot.slane %v433, 2
        %v435 = vadd.f32 %v433, %v434
        %v436 = vrot.slane %v435, 1
        %v437 = vadd.f32 %v435, %v436
        %s438 = vtos %v437
        %vm439 = vcmp.eq.s32.totalorder %v246, 0
        %s440 = ssub.f32 %s396, %s375
        %v441 = vstv %s440
        %v442 = vsel %vm439, %v441, 0.0
        %vm443 = vcmp.eq.s32.totalorder %v246, 1
        %s444 = ssub.f32 %s417, %s396
        %v445 = vstv %s444
        %v446 = vsel %vm443, %v445, %v442
        %vm447 = vcmp.eq.s32.totalorder %v246, 2
        %s448 = ssub.f32 %s438, %s417
        %v449 = vstv %s448
        %v450 = vsel %vm447, %v449, %v446
        %v451 = vld [vmem:[%s221] sm:$0x1]
        %v452 = vadd.f32 %v451, %v450
        %453 = vst [vmem:[%s221] sm:$0x1] %v452
        %p454 = scmp.eq.s32.totalorder %s32, 1
        // Predicated region
        $region41: #{tpu_custom_call.1} parent=27 // pred_check
          %p455 = pneg %p454
        $region42: #{tpu_custom_call.1} parent=27 // pred_check_branch
          %457 = sbr.rel (%p455) target = $region44
        $region43: #{tpu_custom_call.1} parent=27 // pred_region
          %s458 = sld [smem:[#allocation3 + %s376]]
          %s459 = sld [smem:[#allocation3 + %s355]]
          %s460 = ssub.s32 %s458, %s459
          %p461 = scmp.gt.s32.totalorder %s460, 1
          %s462 = scalar_select %p461, %s460, 1
          %s463 = scvt.s32.f32 %s462
          %v464 = vstv %s463
          %v465 = vsel %vm439, %v464, 1.0
          %s466 = sld [smem:[#allocation3 + %s397]]
          %s467 = ssub.s32 %s466, %s458
          %p468 = scmp.gt.s32.totalorder %s467, 1
          %s469 = scalar_select %p468, %s467, 1
          %s470 = scvt.s32.f32 %s469
          %v471 = vstv %s470
          %v472 = vsel %vm443, %v471, %v465
          %s473 = sld [smem:[#allocation3 + %s418]]
          %s474 = ssub.s32 %s473, %s466
          %p475 = scmp.gt.s32.totalorder %s474, 1
          %s476 = scalar_select %p475, %s474, 1
          %s477 = scvt.s32.f32 %s476
          %v478 = vstv %s477
          %v479 = vsel %vm447, %v478, %v472
          %v480 = vld [vmem:[%s221] sm:$0x1]
          %v481 = vrcp.pop %v479
          %v482 = vmul.f32 %v480, %v481
          %483 = vst [vmem:[%s221] sm:$0x1] %v482
        $region44: #{tpu_custom_call.1} parent=27 // pred_fallthru
          _
        %s484 = sand.u32 %s103, 1
        %s485 = scalar_lea.sflag [#allocation6], %s484
        %s486 = sand.u32 %s103, 1
        %s487 = scalar_lea.vmem [#allocation9], %s486
        // Predicated region
        $region45: #{tpu_custom_call.1} parent=27 // pred_check
          %p488 = pneg %p113
        $region46: #{tpu_custom_call.1} parent=27 // pred_check_branch
          %490 = sbr.rel (%p488) target = $region48
        $region47: #{tpu_custom_call.1} parent=27 // pred_region
          %s492 = ssub.s32 16, 16
          %493 = vsyncadd %s485, %s492
          %s494 = smul.addr %s31, 16
          %s495 = scalar_lea.hbm %s3, %s494
          %s497 = sshll.u32 %s487, 4
          %s498 = int_to_ptr.vmem [resolvable:$true] %s497
          %500 = dma.vmem_to_hbm [thread:$0]  %s498, 16, %s495, %s485
        $region48: #{tpu_custom_call.1} parent=27 // pred_fallthru
          _
      $region28: #{tpu_custom_call.1} parent=5 // pred_fallthru
        _
      %p501 = scmp.le.s32.totalorder 2, %s22
      // Predicated region
      $region49: #{tpu_custom_call.1} parent=5 // pred_check
        %p502 = pneg %p501
      $region50: #{tpu_custom_call.1} parent=5 // pred_check_branch
        %504 = sbr.rel (%p502) target = $region52
      $region51: #{tpu_custom_call.1} parent=5 // pred_region
        %s505 = ssub.s32 %s22, 2
        // Predicated region
        $region53: #{tpu_custom_call.1} parent=51 // pred_check
          %p506 = pneg %p119
        $region54: #{tpu_custom_call.1} parent=51 // pred_check_branch
          %508 = sbr.rel (%p506) target = $region56
        $region55: #{tpu_custom_call.1} parent=51 // pred_region
          %s509 = sand.u32 %s104, 1
          %s510 = scalar_lea.sflag [#allocation6], %s509
          %s511 = sand.u32 %s104, 1
          %s512 = scalar_lea.vmem [#allocation9], %s511
          %513 = dma.done %s510, 16
        $region56: #{tpu_custom_call.1} parent=51 // pred_fallthru
          _
      $region52: #{tpu_custom_call.1} parent=5 // pred_fallthru
        _
    $region6: #{tpu_custom_call.1} parent=1 // loop_footer
      %s26 = sadd.s32 1, %s22
    $region7: #{tpu_custom_call.1} parent=1 // loop_footer_branch
      %21 = sbr.rel target = $region3
    $region8: #{tpu_custom_call.1} parent=1 // loop_exit
      _
    %514 = vsyncpa [#allocation5], 1
    %s515 = scalar_lea.sflag [#allocation5], 1
    %516 = vsyncpa %s515, 1
    %517 = vsyncpa [#allocation8], 1
    %s518 = scalar_lea.sflag [#allocation8], 1
    %519 = vsyncpa %s518, 1
    %520 = vsyncpa [#allocation6], 1
    %s521 = scalar_lea.sflag [#allocation6], 1
    %522 = vsyncpa %s521, 1

</llo_original>
